<compile_context>
chip_gen: v5e
topology: v5e:2x2
jax: 0.10.0
libtpu: 0.0.40
codegen_flags: <defaults>
</compile_context>

<pallas_src>
import math

import jax
import jax.numpy as jnp
from jax import lax
from jax.experimental import pallas as pl
from jax.experimental.pallas import tpu as pltpu
import numpy as np


# ----------------------------- math helpers --------------------------------
def _layernorm(v, w, b, eps=1e-5):
    mu = jnp.mean(v, axis=-1, keepdims=True)
    var = jnp.mean((v - mu) ** 2, axis=-1, keepdims=True)
    return (v - mu) * lax.rsqrt(var + eps) * w + b


def _gelu_tanh(x):
    # Matches torch.nn.GELU(approximate='tanh')
    c = math.sqrt(2.0 / math.pi)
    return 0.5 * x * (1.0 + jnp.tanh(c * (x + 0.044715 * x * x * x)))


# ----------------------------- tiling helpers -------------------------------
def _row_tile(n, cap):
    """Largest multiple-of-8 divisor of n that is <= cap; else n (full dim)."""
    best = None
    for c in range(8, min(n, cap) + 1, 8):
        if n % c == 0:
            best = c
    return best if best is not None else n


def _lane_tile(n, cap):
    """Largest multiple-of-128 divisor of n that is <= cap; else n (full dim)."""
    best = None
    for c in range(128, min(n, cap) + 1, 128):
        if n % c == 0:
            best = c
    return best if best is not None else n


def _largest_divisor(n, pred):
    best = 1
    for d in range(1, n + 1):
        if n % d == 0 and pred(d):
            best = d
    return best


def _physical_vmem_bytes():
    try:
        return int(getattr(pltpu.get_tpu_info(), "vmem_capacity_bytes"))
    except Exception:
        return 64 << 20  # conservative default (v7x per-TensorCore VMEM)


def _vmem_limit(*nbytes):
    """Explicit VMEM budget: 2x (double buffering) + headroom, clamped to HW."""
    need = 2 * sum(int(b) for b in nbytes) + (4 << 20)
    cap = _physical_vmem_bytes() - (8 << 20)
    return int(max(min(need, cap), 16 << 20))


# -------------- kernel 1: LN1 + fused QKV projection (head-major out) -------
def qkv_kernel(x_ref, ln1w_ref, ln1b_ref, w_ref, b_ref, o_ref, h_sc):
    j = pl.program_id(2)

    @pl.when(j == 0)
    def _():
        h = _layernorm(x_ref[...], ln1w_ref[...], ln1b_ref[...])   # f32
        h_sc[...] = h.astype(jnp.bfloat16)                         # cached

    # Wide matmul over a head-group column tile (bf16 x bf16 -> f32 on MXU).
    t = jnp.dot(h_sc[...], w_ref[...],
                preferred_element_type=jnp.float32) + b_ref[...]
    t = t.astype(o_ref.dtype)
    hg, _, hd = o_ref.shape
    for g in range(hg):                      # static unroll: per-head store
        o_ref[g] = t[:, g * hd:(g + 1) * hd]


# ------------------ kernel 2: flash-style causal attention ------------------
def flash_attn_kernel(q_ref, k_ref, v_ref, o_ref, m_sc, l_sc, acc_sc):
    qi = pl.program_id(2)
    ki = pl.program_id(3)
    tq = q_ref.shape[1]
    tk = k_ref.shape[1]

    @pl.when(ki == 0)
    def _():
        m_sc[...] = jnp.full_like(m_sc, -1e30)
        l_sc[...] = jnp.zeros_like(l_sc)
        acc_sc[...] = jnp.zeros_like(acc_sc)

    # Fully-masked (above-diagonal) KV blocks: compute skipped here, DMA
    # skipped via the clamped index_map in the BlockSpec.
    @pl.when(ki * tk <= qi * tq + (tq - 1))
    def _():
        q = q_ref[...]                        # (hg, tq, hd) bf16, scale folded
        k = k_ref[...]                        # (hg, tk, hd) bf16
        v = v_ref[...]                        # (hg, tk, hd) bf16
        s = jnp.einsum('hqd,hkd->hqk', q, k,
                       preferred_element_type=jnp.float32)          # f32
        row = qi * tq + lax.broadcasted_iota(jnp.int32, (tq, tk), 0)
        col = ki * tk + lax.broadcasted_iota(jnp.int32, (tq, tk), 1)
        s = jnp.where(row >= col, s, -1e30)

        m_prev = m_sc[...]
        m_new = jnp.maximum(m_prev, jnp.max(s, axis=-1, keepdims=True))
        alpha = jnp.exp(m_prev - m_new)
        p = jnp.exp(s - m_new)
        l_sc[...] = alpha * l_sc[...] + jnp.sum(p, axis=-1, keepdims=True)
        acc_sc[...] = alpha * acc_sc[...] + jnp.einsum(
            'hqk,hkd->hqd', p.astype(v.dtype), v,
            preferred_element_type=jnp.float32)
        m_sc[...] = m_new

    @pl.when(ki == pl.num_programs(3) - 1)
    def _():
        inv_l = pl.reciprocal(l_sc[...], approx=True)       # EUP slot
        o_ref[...] = (acc_sc[...] * inv_l).astype(o_ref.dtype)


# ------------- kernel 3: attention out-projection + residual ---------------
def outproj_kernel(y_ref, x_ref, w_ref, b_ref, o_ref):
    o = jnp.dot(y_ref[...], w_ref[...],
                preferred_element_type=jnp.float32) + b_ref[...]
    o_ref[...] = (x_ref[...] + o).astype(o_ref.dtype)


# --------------- kernel 4: LN2 + MLP (H-streamed) + residual ----------------
def mlp_kernel(x1_ref, ln2w_ref, ln2b_ref, wfc_ref, bfc_ref,
               wpr2_ref, bpr2_ref, o_ref, h_sc, acc_sc):
    j = pl.program_id(1)

    @pl.when(j == 0)
    def _():
        h = _layernorm(x1_ref[...], ln2w_ref[...], ln2b_ref[...])  # f32
        h_sc[...] = h.astype(jnp.bfloat16)
        acc_sc[...] = jnp.zeros_like(acc_sc)

    f = jnp.dot(h_sc[...], wfc_ref[...],
                preferred_element_type=jnp.float32) + bfc_ref[...]
    g = _gelu_tanh(f)                                              # f32 GELU
    acc_sc[...] += jnp.dot(g.astype(jnp.bfloat16), wpr2_ref[...],
                           preferred_element_type=jnp.float32)

    @pl.when(j == pl.num_programs(1) - 1)
    def _():
        o_ref[...] = (x1_ref[...] + acc_sc[...] + bpr2_ref[...]).astype(o_ref.dtype)


# ------------------------ one-time parameter prep ---------------------------
def prepare_block_params(params, n_head):
    """Fold q-scale, cast matmul weights to bf16, re-lay QKV weight head-major.

    Done once per parameter set (hoisted out of the hot path)."""
    (ln1w, ln1b, wqkv, bqkv, wpr, bpr,
     ln2w, ln2b, wfc, bfc, wpr2, bpr2) = params
    C = wqkv.shape[0]
    H = wfc.shape[1]
    assert C % n_head == 0
    hd = C // n_head
    nh3 = 3 * n_head

    # Fold 1/sqrt(hd) into the q projection (exact weight folding).
    scale = 1.0 / math.sqrt(hd)
    wqkv_f = wqkv.at[:, :C].multiply(scale)
    bqkv_f = bqkv.at[:, :C].multiply(scale)

    # Column-tile the QKV projection by groups of heads so kernel 1 streams
    # the weight and emits q/k/v directly in head-major layout.
    hg = _largest_divisor(nh3, lambda d: d * hd <= 768)
    n_nt = nh3 // hg
    tn = hg * hd
    w_qkv = (wqkv_f.reshape(C, 3, n_head, hd)
                   .transpose(1, 2, 0, 3)            # (3, nh, C, hd)
                   .reshape(nh3, C, hd)
                   .reshape(n_nt, hg, C, hd)
                   .transpose(0, 2, 1, 3)            # (n_nt, C, hg, hd)
                   .reshape(n_nt, C, tn)
                   .astype(jnp.bfloat16))
    b_qkv = bqkv_f.reshape(nh3, hd).reshape(n_nt, 1, tn).astype(jnp.float32)

    return dict(
        n_head=n_head, head_dim=hd, n_embd=C, n_hidden=H,
        qkv_head_group=hg, qkv_n_tiles=n_nt,
        ln1w=ln1w, ln1b=ln1b, w_qkv=w_qkv, b_qkv=b_qkv,
        w_proj=wpr.astype(jnp.bfloat16), b_proj=bpr,
        ln2w=ln2w, ln2b=ln2b,
        w_fc=wfc.astype(jnp.bfloat16), b_fc=bfc,
        w_proj2=wpr2.astype(jnp.bfloat16), b_proj2=bpr2,
    )


# ------------------------------ wrapper -------------------------------------
def transformer_block(x, prep):
    B, T, C = x.shape
    nh = prep["n_head"]
    hd = prep["head_dim"]
    H = prep["n_hidden"]
    assert C == prep["n_embd"]
    nh3 = 3 * nh
    rows = B * T

    # ---- tile sizes ----
    trt = _row_tile(T, 512)                        # phase-1 row tile (within T)
    tq = _row_tile(T, 256)                         # attention q tile
    tk = _row_tile(T, 256)                         # attention kv tile
    hg_q = prep["qkv_head_group"]
    n_nt = prep["qkv_n_tiles"]
    tn = hg_q * hd
    hg_a = _largest_divisor(nh, lambda d: d <= 8)  # attention head group
    tr_a = _row_tile(rows, 512)                    # out-proj row tile
    tr_m = _row_tile(rows, 256)                    # MLP row tile
    tcn = _lane_tile(C, 1024)                      # out-proj column tile
    th = _lane_tile(H, 512)                        # MLP hidden tile

    # ---- phase 1: LN1 + fused QKV projection, head-major output ----
    qkv_hm = pl.pallas_call(
        qkv_kernel,
        out_shape=jax.ShapeDtypeStruct((nh3, B, T, hd), jnp.bfloat16),
        grid=(B, T // trt, n_nt),
        in_specs=[
            pl.BlockSpec((None, trt, C), lambda b, ti, j: (b, ti, 0)),    # x
            pl.BlockSpec((1, C), lambda b, ti, j: (0, 0)),                # ln1 w
            pl.BlockSpec((1, C), lambda b, ti, j: (0, 0)),                # ln1 b
            pl.BlockSpec((None, C, tn), lambda b, ti, j: (j, 0, 0)),      # W tile
            pl.BlockSpec((None, 1, tn), lambda b, ti, j: (j, 0, 0)),      # b tile
        ],
        out_specs=pl.BlockSpec((hg_q, None, trt, hd),
                               lambda b, ti, j: (j, b, ti, 0)),
        scratch_shapes=[pltpu.VMEM((trt, C), jnp.bfloat16)],
        compiler_params=pltpu.CompilerParams(
            dimension_semantics=("parallel", "parallel", "arbitrary"),
            vmem_limit_bytes=_vmem_limit(
                trt * C * 4, trt * C * 2, C * tn * 2, tn * 4,
                trt * tn * 2, trt * tn * 4, 2 * C * 4)),
    )(x, prep["ln1w"], prep["ln1b"], prep["w_qkv"], prep["b_qkv"])

    # ---- phase 2: flash-style causal attention ----
    n_q, n_kv = T // tq, T // tk
    n_hg = nh // hg_a

    def _q_idx(b, g, qi, ki):
        return (g, b, qi, 0)

    def _kv_idx(sel):
        base = sel * (nh // hg_a)

        def idx(b, g, qi, ki):
            # Clamp above-diagonal KV steps to the last needed block index so
            # Pallas skips the re-fetch (compute is skipped by pl.when).
            last = (qi * tq + tq - 1) // tk
            return (base + g, b, jnp.minimum(ki, last), 0)
        return idx

    y_hm = pl.pallas_call(
        flash_attn_kernel,
        out_shape=jax.ShapeDtypeStruct((nh, B, T, hd), jnp.bfloat16),
        grid=(B, n_hg, n_q, n_kv),
        in_specs=[
            pl.BlockSpec((hg_a, None, tq, hd), _q_idx),       # q heads
            pl.BlockSpec((hg_a, None, tk, hd), _kv_idx(1)),   # k heads
            pl.BlockSpec((hg_a, None, tk, hd), _kv_idx(2)),   # v heads
        ],
        out_specs=pl.BlockSpec((hg_a, None, tq, hd),
                               lambda b, g, qi, ki: (g, b, qi, 0)),
        scratch_shapes=[
            pltpu.VMEM((hg_a, tq, 1), jnp.float32),    # running max
            pltpu.VMEM((hg_a, tq, 1), jnp.float32),    # running denom
            pltpu.VMEM((hg_a, tq, hd), jnp.float32),   # output accumulator
        ],
        compiler_params=pltpu.CompilerParams(
            dimension_semantics=("parallel", "parallel", "parallel", "arbitrary"),
            vmem_limit_bytes=_vmem_limit(
                3 * hg_a * max(tq, tk) * hd * 2, hg_a * tq * hd * 2,
                2 * hg_a * tq * tk * 4, hg_a * tq * (hd + 2) * 4)),
    )(qkv_hm, qkv_hm, qkv_hm)

    # Merge heads: single remaining XLA transpose (q/k/v split transposes were
    # eliminated by producing head-major output in phase 1).
    y2d = y_hm.transpose(1, 2, 0, 3).reshape(rows, C)
    x2d = x.reshape(rows, C)

    # ---- phase 3: attention out-projection + residual (column-streamed) ----
    x1 = pl.pallas_call(
        outproj_kernel,
        out_shape=jax.ShapeDtypeStruct((rows, C), jnp.float32),
        grid=(rows // tr_a, C // tcn),
        in_specs=[
            pl.BlockSpec((tr_a, C), lambda i, j: (i, 0)),        # attn out (bf16)
            pl.BlockSpec((tr_a, tcn), lambda i, j: (i, j)),      # residual x
            pl.BlockSpec((C, tcn), lambda i, j: (0, j)),         # c_proj W tile
            pl.BlockSpec((1, tcn), lambda i, j: (0, j)),         # c_proj b tile
        ],
        out_specs=pl.BlockSpec((tr_a, tcn), lambda i, j: (i, j)),
        compiler_params=pltpu.CompilerParams(
            dimension_semantics=("parallel", "parallel"),
            vmem_limit_bytes=_vmem_limit(
                tr_a * C * 2, 2 * tr_a * tcn * 4, C * tcn * 2, tcn * 4)),
    )(y2d, x2d, prep["w_proj"], prep["b_proj"])

    # ---- phase 4: LN2 + MLP (fc -> GELU -> proj, H-streamed) + residual ----
    out2d = pl.pallas_call(
        mlp_kernel,
        out_shape=jax.ShapeDtypeStruct((rows, C), x.dtype),
        grid=(rows // tr_m, H // th),
        in_specs=[
            pl.BlockSpec((tr_m, C), lambda i, j: (i, 0)),        # x1 (f32)
            pl.BlockSpec((1, C), lambda i, j: (0, 0)),           # ln2 w
            pl.BlockSpec((1, C), lambda i, j: (0, 0)),           # ln2 b
            pl.BlockSpec((C, th), lambda i, j: (0, j)),          # c_fc W tile
            pl.BlockSpec((1, th), lambda i, j: (0, j)),          # c_fc b tile
            pl.BlockSpec((th, C), lambda i, j: (j, 0)),          # mlp proj W tile
            pl.BlockSpec((1, C), lambda i, j: (0, 0)),           # mlp proj b
        ],
        out_specs=pl.BlockSpec((tr_m, C), lambda i, j: (i, 0)),
        scratch_shapes=[pltpu.VMEM((tr_m, C), jnp.bfloat16),     # LN2(x1) cache
                        pltpu.VMEM((tr_m, C), jnp.float32)],     # accumulator
        compiler_params=pltpu.CompilerParams(
            dimension_semantics=("parallel", "arbitrary"),
            vmem_limit_bytes=_vmem_limit(
                2 * tr_m * C * 4, tr_m * C * 2, tr_m * C * 4,
                C * th * 2, th * C * 2, 2 * tr_m * th * 4, th * 4, 2 * C * 4)),
    )(x1, prep["ln2w"], prep["ln2b"], prep["w_fc"], prep["b_fc"],
      prep["w_proj2"], prep["b_proj2"])

    return out2d.reshape(B, T, C)


# ------------------------ reference (pure JAX, f32) --------------------------
def block_ref(x, params, n_head):
    (ln1w, ln1b, wqkv, bqkv, wpr, bpr,
     ln2w, ln2b, wfc, bfc, wpr2, bpr2) = params
    B, T, C = x.shape
    hd = C // n_head

    h = _layernorm(x, ln1w[0], ln1b[0])
    qkv = h @ wqkv + bqkv[0]
    q, k, v = qkv[..., :C], qkv[..., C:2 * C], qkv[..., 2 * C:]
    q = q.reshape(B, T, n_head, hd).transpose(0, 2, 1, 3)
    k = k.reshape(B, T, n_head, hd).transpose(0, 2, 1, 3)
    v = v.reshape(B, T, n_head, hd).transpose(0, 2, 1, 3)
    s = jnp.einsum("bhqd,bhkd->bhqk", q, k) / math.sqrt(hd)
    mask = jnp.tril(jnp.ones((T, T), bool))
    s = jnp.where(mask, s, -1e30)
    p = jax.nn.softmax(s, axis=-1)
    y = jnp.einsum("bhqk,bhkd->bhqd", p, v).transpose(0, 2, 1, 3).reshape(B, T, C)
    x1 = x + (y @ wpr + bpr[0])

    h2 = _layernorm(x1, ln2w[0], ln2b[0])
    f = _gelu_tanh(h2 @ wfc + bfc[0])
    return x1 + (f @ wpr2 + bpr2[0])


if __name__ == "__main__":
    B, T, C, n_head = 2, 8, 32, 4
    H = 4 * C
    ks = jax.random.split(jax.random.PRNGKey(0), 9)

    # Deterministic synthetic parameters (PyTorch nn.Linear weight is (out,in);
    # we store the transposed (in,out) layout so kernels do x @ W + b).
    params = (
        jnp.ones((1, C), jnp.float32),                              # ln1 weight
        jnp.zeros((1, C), jnp.float32),                             # ln1 bias
        0.02 * jax.random.normal(ks[0], (C, 3 * C), jnp.float32),   # c_attn W^T
        0.02 * jax.random.normal(ks[1], (1, 3 * C), jnp.float32),   # c_attn b
        0.02 * jax.random.normal(ks[2], (C, C), jnp.float32),       # c_proj W^T
        0.02 * jax.random.normal(ks[3], (1, C), jnp.float32),       # c_proj b
        jnp.ones((1, C), jnp.float32),                              # ln2 weight
        jnp.zeros((1, C), jnp.float32),                             # ln2 bias
        0.02 * jax.random.normal(ks[4], (C, H), jnp.float32),       # c_fc W^T
        0.02 * jax.random.normal(ks[5], (1, H), jnp.float32),       # c_fc b
        0.02 * jax.random.normal(ks[6], (H, C), jnp.float32),       # mlp proj W^T
        0.02 * jax.random.normal(ks[7], (1, C), jnp.float32),       # mlp proj b
    )

    x = jax.random.normal(ks[8], (B, T, C), jnp.float32)

    prep = prepare_block_params(params, n_head)      # one-time weight prep
    out = transformer_block(x, prep)
    out = jax.block_until_ready(out)

    ref = block_ref(x, params, n_head)
    np.testing.assert_allclose(np.asarray(out), np.asarray(ref),
                               atol=3e-3, rtol=3e-3)
    print("KERNEL_OK")
</pallas_src>

<mosaic_0001>
module attributes {stable_mosaic.version = 11 : i64} {
  func.func @qkv_kernel(%arg0: i32, %arg1: i32, %arg2: i32, %arg3: memref<1x8x32xf32, #tpu.memory_space<vmem>>, %arg4: memref<1x32xf32, #tpu.memory_space<vmem>>, %arg5: memref<1x32xf32, #tpu.memory_space<vmem>>, %arg6: memref<1x32x96xbf16, #tpu.memory_space<vmem>>, %arg7: memref<1x1x96xf32, #tpu.memory_space<vmem>>, %arg8: memref<12x1x8x8xbf16, #tpu.memory_space<vmem>>, %arg9: memref<8x32xbf16, #tpu.memory_space<vmem>>) attributes {dimension_semantics = [#tpu.dimension_semantics<parallel>, #tpu.dimension_semantics<parallel>, #tpu.dimension_semantics<arbitrary>], iteration_bounds = array<i64: 2, 1, 1>, scalar_prefetch = 0 : i64, scratch_operands = 1 : i64, tpu.core_type = #tpu.core_type<tc>, window_params = [{transform_indices = @transform_0, window_bounds = array<i64: 1, 8, 32>}, {pipeline_mode = #tpu.pipeline_mode<synchronous>, transform_indices = @transform_1, window_bounds = array<i64: 1, 32>}, {pipeline_mode = #tpu.pipeline_mode<synchronous>, transform_indices = @transform_2, window_bounds = array<i64: 1, 32>}, {transform_indices = @transform_3, window_bounds = array<i64: 1, 32, 96>}, {transform_indices = @transform_4, window_bounds = array<i64: 1, 1, 96>}, {transform_indices = @transform_5, window_bounds = array<i64: 12, 1, 8, 8>}]} {
    %c0_i32 = arith.constant 0 : i32
    %0 = arith.cmpi eq, %arg2, %c0_i32 : i32
    %1 = arith.extui %0 : i1 to i32
    %c0_i32_0 = arith.constant 0 : i32
    %2 = arith.cmpi ne, %1, %c0_i32_0 : i32
    scf.if %2 {
      %c0_45 = arith.constant 0 : index
      %c0_46 = arith.constant 0 : index
      %c0_47 = arith.constant 0 : index
      %60 = vector.load %arg3[%c0_45, %c0_46, %c0_47] : memref<1x8x32xf32, #tpu.memory_space<vmem>>, vector<1x8x32xf32>
      %61 = vector.shape_cast %60 : vector<1x8x32xf32> to vector<8x32xf32>
      %c0_48 = arith.constant 0 : index
      %c0_49 = arith.constant 0 : index
      %62 = vector.load %arg4[%c0_48, %c0_49] : memref<1x32xf32, #tpu.memory_space<vmem>>, vector<1x32xf32>
      %c0_50 = arith.constant 0 : index
      %c0_51 = arith.constant 0 : index
      %63 = vector.load %arg5[%c0_50, %c0_51] : memref<1x32xf32, #tpu.memory_space<vmem>>, vector<1x32xf32>
      %cst_52 = arith.constant dense<0.000000e+00> : vector<8xf32>
      %64 = vector.multi_reduction <add>, %61, %cst_52 [1] : vector<8x32xf32> to vector<8xf32>
      %65 = vector.shape_cast %64 : vector<8xf32> to vector<8x1xf32>
      %cst_53 = arith.constant 3.200000e+01 : f32
      %66 = vector.broadcast %cst_53 : f32 to vector<8x1xf32>
      %67 = arith.divf %65, %66 : vector<8x1xf32>
      %68 = vector.broadcast %67 : vector<8x1xf32> to vector<8x32xf32>
      %69 = arith.subf %61, %68 : vector<8x32xf32>
      %70 = arith.mulf %69, %69 : vector<8x32xf32>
      %cst_54 = arith.constant dense<0.000000e+00> : vector<8xf32>
      %71 = vector.multi_reduction <add>, %70, %cst_54 [1] : vector<8x32xf32> to vector<8xf32>
      %72 = vector.shape_cast %71 : vector<8xf32> to vector<8x1xf32>
      %cst_55 = arith.constant 3.200000e+01 : f32
      %73 = vector.broadcast %cst_55 : f32 to vector<8x1xf32>
      %74 = arith.divf %72, %73 : vector<8x1xf32>
      %75 = vector.broadcast %67 : vector<8x1xf32> to vector<8x32xf32>
      %76 = arith.subf %61, %75 : vector<8x32xf32>
      %cst_56 = arith.constant 9.99999974E-6 : f32
      %77 = vector.broadcast %cst_56 : f32 to vector<8x1xf32>
      %78 = arith.addf %74, %77 : vector<8x1xf32>
      %79 = math.rsqrt %78 : vector<8x1xf32>
      %80 = vector.broadcast %79 : vector<8x1xf32> to vector<8x32xf32>
      %81 = arith.mulf %76, %80 : vector<8x32xf32>
      %82 = vector.broadcast %62 : vector<1x32xf32> to vector<8x32xf32>
      %83 = arith.mulf %81, %82 : vector<8x32xf32>
      %84 = vector.broadcast %63 : vector<1x32xf32> to vector<8x32xf32>
      %85 = arith.addf %83, %84 : vector<8x32xf32>
      %86 = arith.truncf %85 : vector<8x32xf32> to vector<8x32xbf16>
      %c0_57 = arith.constant 0 : index
      %c0_58 = arith.constant 0 : index
      %87 = vector.load %arg9[%c0_57, %c0_58] : memref<8x32xbf16, #tpu.memory_space<vmem>>, vector<8x32xbf16>
      tpu.vector_store %arg9[%c0_57, %c0_58], %86 {strides = array<i32>} : memref<8x32xbf16, #tpu.memory_space<vmem>>, vector<8x32xbf16>,
    } else {
    }
    %c0 = arith.constant 0 : index
    %c0_1 = arith.constant 0 : index
    %3 = vector.load %arg9[%c0, %c0_1] : memref<8x32xbf16, #tpu.memory_space<vmem>>, vector<8x32xbf16>
    %c0_2 = arith.constant 0 : index
    %c0_3 = arith.constant 0 : index
    %c0_4 = arith.constant 0 : index
    %4 = vector.load %arg6[%c0_2, %c0_3, %c0_4] : memref<1x32x96xbf16, #tpu.memory_space<vmem>>, vector<1x32x96xbf16>
    %5 = vector.shape_cast %4 : vector<1x32x96xbf16> to vector<32x96xbf16>
    %cst = arith.constant dense<0.000000e+00> : vector<8x96xf32>
    %6 = tpu.matmul %3, %5, %cst {dimension_numbers = #tpu.dot_dimension_numbers<[1], [0], [0], [1], [0, 0, 1, 1], [], []>} : vector<8x32xbf16>, vector<32x96xbf16>, vector<8x96xf32> -> vector<8x96xf32>
    %c0_5 = arith.constant 0 : index
    %c0_6 = arith.constant 0 : index
    %c0_7 = arith.constant 0 : index
    %7 = vector.load %arg7[%c0_5, %c0_6, %c0_7] : memref<1x1x96xf32, #tpu.memory_space<vmem>>, vector<1x1x96xf32>
    %8 = vector.shape_cast %7 : vector<1x1x96xf32> to vector<1x96xf32>
    %9 = vector.broadcast %8 : vector<1x96xf32> to vector<8x96xf32>
    %10 = arith.addf %6, %9 : vector<8x96xf32>
    %11 = arith.truncf %10 : vector<8x96xf32> to vector<8x96xbf16>
    %12 = vector.extract_strided_slice %11 {offsets = [0, 0], sizes = [8, 8], strides = [1, 1]} : vector<8x96xbf16> to vector<8x8xbf16>
    %c0_8 = arith.constant 0 : index
    %c0_9 = arith.constant 0 : index
    %c0_10 = arith.constant 0 : index
    %c0_11 = arith.constant 0 : index
    %13 = vector.load %arg8[%c0_8, %c0_9, %c0_10, %c0_11] : memref<12x1x8x8xbf16, #tpu.memory_space<vmem>>, vector<1x1x8x8xbf16>
    %14 = vector.shape_cast %13 : vector<1x1x8x8xbf16> to vector<8x8xbf16>
    %15 = vector.shape_cast %12 : vector<8x8xbf16> to vector<1x1x8x8xbf16>
    tpu.vector_store %arg8[%c0_8, %c0_9, %c0_10, %c0_11], %15 {strides = array<i32>} : memref<12x1x8x8xbf16, #tpu.memory_space<vmem>>, vector<1x1x8x8xbf16>,
    %16 = vector.extract_strided_slice %11 {offsets = [0, 8], sizes = [8, 8], strides = [1, 1]} : vector<8x96xbf16> to vector<8x8xbf16>
    %c1 = arith.constant 1 : index
    %c0_12 = arith.constant 0 : index
    %c0_13 = arith.constant 0 : index
    %c0_14 = arith.constant 0 : index
    %17 = vector.load %arg8[%c1, %c0_12, %c0_13, %c0_14] : memref<12x1x8x8xbf16, #tpu.memory_space<vmem>>, vector<1x1x8x8xbf16>
    %18 = vector.shape_cast %17 : vector<1x1x8x8xbf16> to vector<8x8xbf16>
    %19 = vector.shape_cast %16 : vector<8x8xbf16> to vector<1x1x8x8xbf16>
    tpu.vector_store %arg8[%c1, %c0_12, %c0_13, %c0_14], %19 {strides = array<i32>} : memref<12x1x8x8xbf16, #tpu.memory_space<vmem>>, vector<1x1x8x8xbf16>,
    %20 = vector.extract_strided_slice %11 {offsets = [0, 16], sizes = [8, 8], strides = [1, 1]} : vector<8x96xbf16> to vector<8x8xbf16>
    %c2 = arith.constant 2 : index
    %c0_15 = arith.constant 0 : index
    %c0_16 = arith.constant 0 : index
    %c0_17 = arith.constant 0 : index
    %21 = vector.load %arg8[%c2, %c0_15, %c0_16, %c0_17] : memref<12x1x8x8xbf16, #tpu.memory_space<vmem>>, vector<1x1x8x8xbf16>
    %22 = vector.shape_cast %21 : vector<1x1x8x8xbf16> to vector<8x8xbf16>
    %23 = vector.shape_cast %20 : vector<8x8xbf16> to vector<1x1x8x8xbf16>
    tpu.vector_store %arg8[%c2, %c0_15, %c0_16, %c0_17], %23 {strides = array<i32>} : memref<12x1x8x8xbf16, #tpu.memory_space<vmem>>, vector<1x1x8x8xbf16>,
    %24 = vector.extract_strided_slice %11 {offsets = [0, 24], sizes = [8, 8], strides = [1, 1]} : vector<8x96xbf16> to vector<8x8xbf16>
    %c3 = arith.constant 3 : index
    %c0_18 = arith.constant 0 : index
    %c0_19 = arith.constant 0 : index
    %c0_20 = arith.constant 0 : index
    %25 = vector.load %arg8[%c3, %c0_18, %c0_19, %c0_20] : memref<12x1x8x8xbf16, #tpu.memory_space<vmem>>, vector<1x1x8x8xbf16>
    %26 = vector.shape_cast %25 : vector<1x1x8x8xbf16> to vector<8x8xbf16>
    %27 = vector.shape_cast %24 : vector<8x8xbf16> to vector<1x1x8x8xbf16>
    tpu.vector_store %arg8[%c3, %c0_18, %c0_19, %c0_20], %27 {strides = array<i32>} : memref<12x1x8x8xbf16, #tpu.memory_space<vmem>>, vector<1x1x8x8xbf16>,
    %28 = vector.extract_strided_slice %11 {offsets = [0, 32], sizes = [8, 8], strides = [1, 1]} : vector<8x96xbf16> to vector<8x8xbf16>
    %c4 = arith.constant 4 : index
    %c0_21 = arith.constant 0 : index
    %c0_22 = arith.constant 0 : index
    %c0_23 = arith.constant 0 : index
    %29 = vector.load %arg8[%c4, %c0_21, %c0_22, %c0_23] : memref<12x1x8x8xbf16, #tpu.memory_space<vmem>>, vector<1x1x8x8xbf16>
    %30 = vector.shape_cast %29 : vector<1x1x8x8xbf16> to vector<8x8xbf16>
    %31 = vector.shape_cast %28 : vector<8x8xbf16> to vector<1x1x8x8xbf16>
    tpu.vector_store %arg8[%c4, %c0_21, %c0_22, %c0_23], %31 {strides = array<i32>} : memref<12x1x8x8xbf16, #tpu.memory_space<vmem>>, vector<1x1x8x8xbf16>,
    %32 = vector.extract_strided_slice %11 {offsets = [0, 40], sizes = [8, 8], strides = [1, 1]} : vector<8x96xbf16> to vector<8x8xbf16>
    %c5 = arith.constant 5 : index
    %c0_24 = arith.constant 0 : index
    %c0_25 = arith.constant 0 : index
    %c0_26 = arith.constant 0 : index
    %33 = vector.load %arg8[%c5, %c0_24, %c0_25, %c0_26] : memref<12x1x8x8xbf16, #tpu.memory_space<vmem>>, vector<1x1x8x8xbf16>
    %34 = vector.shape_cast %33 : vector<1x1x8x8xbf16> to vector<8x8xbf16>
    %35 = vector.shape_cast %32 : vector<8x8xbf16> to vector<1x1x8x8xbf16>
    tpu.vector_store %arg8[%c5, %c0_24, %c0_25, %c0_26], %35 {strides = array<i32>} : memref<12x1x8x8xbf16, #tpu.memory_space<vmem>>, vector<1x1x8x8xbf16>,
    %36 = vector.extract_strided_slice %11 {offsets = [0, 48], sizes = [8, 8], strides = [1, 1]} : vector<8x96xbf16> to vector<8x8xbf16>
    %c6 = arith.constant 6 : index
    %c0_27 = arith.constant 0 : index
    %c0_28 = arith.constant 0 : index
    %c0_29 = arith.constant 0 : index
    %37 = vector.load %arg8[%c6, %c0_27, %c0_28, %c0_29] : memref<12x1x8x8xbf16, #tpu.memory_space<vmem>>, vector<1x1x8x8xbf16>
    %38 = vector.shape_cast %37 : vector<1x1x8x8xbf16> to vector<8x8xbf16>
    %39 = vector.shape_cast %36 : vector<8x8xbf16> to vector<1x1x8x8xbf16>
    tpu.vector_store %arg8[%c6, %c0_27, %c0_28, %c0_29], %39 {strides = array<i32>} : memref<12x1x8x8xbf16, #tpu.memory_space<vmem>>, vector<1x1x8x8xbf16>,
    %40 = vector.extract_strided_slice %11 {offsets = [0, 56], sizes = [8, 8], strides = [1, 1]} : vector<8x96xbf16> to vector<8x8xbf16>
    %c7 = arith.constant 7 : index
    %c0_30 = arith.constant 0 : index
    %c0_31 = arith.constant 0 : index
    %c0_32 = arith.constant 0 : index
    %41 = vector.load %arg8[%c7, %c0_30, %c0_31, %c0_32] : memref<12x1x8x8xbf16, #tpu.memory_space<vmem>>, vector<1x1x8x8xbf16>
    %42 = vector.shape_cast %41 : vector<1x1x8x8xbf16> to vector<8x8xbf16>
    %43 = vector.shape_cast %40 : vector<8x8xbf16> to vector<1x1x8x8xbf16>
    tpu.vector_store %arg8[%c7, %c0_30, %c0_31, %c0_32], %43 {strides = array<i32>} : memref<12x1x8x8xbf16, #tpu.memory_space<vmem>>, vector<1x1x8x8xbf16>,
    %44 = vector.extract_strided_slice %11 {offsets = [0, 64], sizes = [8, 8], strides = [1, 1]} : vector<8x96xbf16> to vector<8x8xbf16>
    %c8 = arith.constant 8 : index
    %c0_33 = arith.constant 0 : index
    %c0_34 = arith.constant 0 : index
    %c0_35 = arith.constant 0 : index
    %45 = vector.load %arg8[%c8, %c0_33, %c0_34, %c0_35] : memref<12x1x8x8xbf16, #tpu.memory_space<vmem>>, vector<1x1x8x8xbf16>
    %46 = vector.shape_cast %45 : vector<1x1x8x8xbf16> to vector<8x8xbf16>
    %47 = vector.shape_cast %44 : vector<8x8xbf16> to vector<1x1x8x8xbf16>
    tpu.vector_store %arg8[%c8, %c0_33, %c0_34, %c0_35], %47 {strides = array<i32>} : memref<12x1x8x8xbf16, #tpu.memory_space<vmem>>, vector<1x1x8x8xbf16>,
    %48 = vector.extract_strided_slice %11 {offsets = [0, 72], sizes = [8, 8], strides = [1, 1]} : vector<8x96xbf16> to vector<8x8xbf16>
    %c9 = arith.constant 9 : index
    %c0_36 = arith.constant 0 : index
    %c0_37 = arith.constant 0 : index
    %c0_38 = arith.constant 0 : index
    %49 = vector.load %arg8[%c9, %c0_36, %c0_37, %c0_38] : memref<12x1x8x8xbf16, #tpu.memory_space<vmem>>, vector<1x1x8x8xbf16>
    %50 = vector.shape_cast %49 : vector<1x1x8x8xbf16> to vector<8x8xbf16>
    %51 = vector.shape_cast %48 : vector<8x8xbf16> to vector<1x1x8x8xbf16>
    tpu.vector_store %arg8[%c9, %c0_36, %c0_37, %c0_38], %51 {strides = array<i32>} : memref<12x1x8x8xbf16, #tpu.memory_space<vmem>>, vector<1x1x8x8xbf16>,
    %52 = vector.extract_strided_slice %11 {offsets = [0, 80], sizes = [8, 8], strides = [1, 1]} : vector<8x96xbf16> to vector<8x8xbf16>
    %c10 = arith.constant 10 : index
    %c0_39 = arith.constant 0 : index
    %c0_40 = arith.constant 0 : index
    %c0_41 = arith.constant 0 : index
    %53 = vector.load %arg8[%c10, %c0_39, %c0_40, %c0_41] : memref<12x1x8x8xbf16, #tpu.memory_space<vmem>>, vector<1x1x8x8xbf16>
    %54 = vector.shape_cast %53 : vector<1x1x8x8xbf16> to vector<8x8xbf16>
    %55 = vector.shape_cast %52 : vector<8x8xbf16> to vector<1x1x8x8xbf16>
    tpu.vector_store %arg8[%c10, %c0_39, %c0_40, %c0_41], %55 {strides = array<i32>} : memref<12x1x8x8xbf16, #tpu.memory_space<vmem>>, vector<1x1x8x8xbf16>,
    %56 = vector.extract_strided_slice %11 {offsets = [0, 88], sizes = [8, 8], strides = [1, 1]} : vector<8x96xbf16> to vector<8x8xbf16>
    %c11 = arith.constant 11 : index
    %c0_42 = arith.constant 0 : index
    %c0_43 = arith.constant 0 : index
    %c0_44 = arith.constant 0 : index
    %57 = vector.load %arg8[%c11, %c0_42, %c0_43, %c0_44] : memref<12x1x8x8xbf16, #tpu.memory_space<vmem>>, vector<1x1x8x8xbf16>
    %58 = vector.shape_cast %57 : vector<1x1x8x8xbf16> to vector<8x8xbf16>
    %59 = vector.shape_cast %56 : vector<8x8xbf16> to vector<1x1x8x8xbf16>
    tpu.vector_store %arg8[%c11, %c0_42, %c0_43, %c0_44], %59 {strides = array<i32>} : memref<12x1x8x8xbf16, #tpu.memory_space<vmem>>, vector<1x1x8x8xbf16>,
    return
  }
  func.func @transform_0(%arg0: i32, %arg1: i32, %arg2: i32) -> (i32, i32, i32) {
    %c0_i32 = arith.constant 0 : i32
    %c0_i32_0 = arith.constant 0 : i32
    return %arg0, %arg1, %c0_i32 : i32, i32, i32
  }
  func.func @transform_1(%arg0: i32, %arg1: i32, %arg2: i32) -> (i32, i32) {
    %c0_i32 = arith.constant 0 : i32
    %c0_i32_0 = arith.constant 0 : i32
    %c0_i32_1 = arith.constant 0 : i32
    return %c0_i32, %c0_i32_0 : i32, i32
  }
  func.func @transform_2(%arg0: i32, %arg1: i32, %arg2: i32) -> (i32, i32) {
    %c0_i32 = arith.constant 0 : i32
    %c0_i32_0 = arith.constant 0 : i32
    %c0_i32_1 = arith.constant 0 : i32
    return %c0_i32, %c0_i32_0 : i32, i32
  }
  func.func @transform_3(%arg0: i32, %arg1: i32, %arg2: i32) -> (i32, i32, i32) {
    %c0_i32 = arith.constant 0 : i32
    %c0_i32_0 = arith.constant 0 : i32
    %c0_i32_1 = arith.constant 0 : i32
    return %arg2, %c0_i32, %c0_i32_0 : i32, i32, i32
  }
  func.func @transform_4(%arg0: i32, %arg1: i32, %arg2: i32) -> (i32, i32, i32) {
    %c0_i32 = arith.constant 0 : i32
    %c0_i32_0 = arith.constant 0 : i32
    %c0_i32_1 = arith.constant 0 : i32
    return %arg2, %c0_i32, %c0_i32_0 : i32, i32, i32
  }
  func.func @transform_5(%arg0: i32, %arg1: i32, %arg2: i32) -> (i32, i32, i32, i32) {
    %c0_i32 = arith.constant 0 : i32
    %c0_i32_0 = arith.constant 0 : i32
    return %arg2, %arg0, %arg1, %c0_i32 : i32, i32, i32, i32
  }
}

</mosaic_0001>

<llo_original>
// kernel: tpu_custom_call.1
$region0: #{tpu_custom_call.1}
  #allocation0 [shape = 'u32[]', space=smem, size = 0x4, offset = 0x4, fixed_abs, tag = 'smem constant byte address 0x4 - core index']
  #allocation1 [shape = 'u32[72,128]{1,0:T(1,128)}', space=vmem, size = 0x9000, scoped, tag = 'internal scratch']
  #allocation2 [shape = 'bf16[8,32]{1,0:T(8,128)(2,1)}', space=vmem, size = 0x800, scoped, tag = 'scratch operand']
  %s0 = inlined_call_operand.hbm [shape: f32[2,8,32], index: 0, kind: input, shape index: {}]
  %s1 = inlined_call_operand.hbm [shape: f32[1,32], index: 1, kind: input, shape index: {}]
  %s2 = inlined_call_operand.vmem [shape: f32[1,32], index: 2, kind: input, shape index: {}]
  %s3 = inlined_call_operand.hbm [shape: bf16[1,32,96], index: 3, kind: input, shape index: {}]
  %s4 = inlined_call_operand.vmem [shape: f32[1,1,96], index: 4, kind: input, shape index: {}]
  %s5 = inlined_call_operand.vmem [shape: bf16[12,2,8,8], index: 5, kind: output, shape index: {}]
  %s6 = sld [smem:[#allocation0]]
  $region106: #{tpu_custom_call.1} parent=0
    _
  %s8 = ssub.s32 1, %s6
  %s9 = scalar_select 0, %s8, %s6
  $region1: #{tpu_custom_call.1} parent=0
    #allocation3 [shape = 'u8[8192]{0}', space=vmem, size = 0x2000, scoped, tag = 'input window, operand 0']
    #allocation4 [shape = 's32[2]{0}', space=sflag, size = 0x8, scoped, tag = 'scoped memory for tpu_custom_call.1']
    #allocation5 [shape = 'u8[512]{0}', space=vmem, size = 0x400, scoped, tag = 'input window, operand 1, single buffered']
    #allocation6 [shape = 's32[1]{0}', space=sflag, size = 0x4, scoped, tag = 'scoped memory for tpu_custom_call.1']
    #allocation7 [shape = 'u8[8192]{0}', space=vmem, size = 0x2000, scoped, tag = 'input window, operand 3, single buffered']
    #allocation8 [shape = 'u8[49152]{0}', space=vmem, size = 0xc000, scoped, tag = 'output window, operand 0']
    %10 = vsyncpa [#allocation4], 0
    %s11 = scalar_lea.sflag [#allocation4], 1
    %12 = vsyncpa %s11, 0
    %13 = vsyncpa [#allocation6], 0
    loop: start=0, step=1, limit=4
    $region2: #{tpu_custom_call.1} parent=1 // loop_pre_header
      _
    $region3: #{tpu_custom_call.1} parent=1 // loop_header
      %s15 = sphi 0, %s19
      %p16 = scmp.ge.s32.totalorder %s15, 4
      %s22 = sphi 0, %s41
      %s23 = sphi 0, %s37
      %s24 = sphi 0, %s33
      %s25 = sphi 0, %s22
      %s26 = sphi 0, %s23
      %s27 = sphi 0, %s24
      %s28 = sphi 0, %s25
      %s29 = sphi 0, %s26
      %s30 = sphi 0, %s27
      %s46 = sphi 0, %s48
      %s49 = sphi 0, %s46
      %s50 = sphi 0, %s49
      %s66 = sphi 0, %s50
      %s70 = sphi 0, %s70
      %s72 = sphi 0, %s70
      %s73 = sphi 0, %s72
      %s87 = sphi 0, %s73
      %s91 = sphi 0, %s91
      %s93 = sphi 0, %s91
      %s94 = sphi 0, %s93
      %s108 = sphi 0, %s94
      %s114 = sphi 0, %s116
      %s117 = sphi 0, %s114
      %s118 = sphi 0, %s117
      %s134 = sphi 0, %s118
      %s140 = sphi 0, %s142
      %s143 = sphi 0, %s140
      %s144 = sphi 0, %s143
      %s160 = sphi 0, %s144
      %s170 = sphi 0, %s172
      %s173 = sphi 0, %s170
      %s174 = sphi 0, %s173
      %s190 = sphi 0, %s174
    $region4: #{tpu_custom_call.1} parent=1 // loop_header_branch
      %18 = sbr.rel (%p16) target = $region8
    $region5: #{tpu_custom_call.1} parent=1 // loop_body
      %s20 = ssub.s32 %s15, 1
      %s21 = ssub.s32 %s15, 2
      %s31 = sadd.s32 1, %s24
      %p32 = scmp.ge.s32.totalorder %s31, 1
      %s33 = scalar_select %p32, 0, %s31
      %s34 = sadd.s32 1, %s23
      %s35 = scalar_select %p32, %s34, %s23
      %p36 = scmp.ge.s32.totalorder %s35, 1
      %s37 = scalar_select %p36, 0, %s35
      %s38 = sadd.s32 1, %s22
      %s39 = scalar_select %p36, %s38, %s22
      %p40 = scmp.ge.s32.totalorder %s39, 2
      %s41 = scalar_select %p40, 0, %s39
      %s42 = ssub.s32 %s22, %s41
      %s43 = ssub.s32 %s23, %s37
      %s44 = sor.u32 %s42, %s43
      %p45 = scmp.eq.s32.totalorder %s44, 0
      %s47 = sadd.s32 %s46, 1
      %s48 = scalar_select %p45, %s46, %s47
      %p51 = pneg %p45
      %p52 = scmp.eq.s32.totalorder %s15, 1
      %p53 = por %p51, %p52
      %p54 = scmp.ne.s32.totalorder %s46, %s49
      %p55 = scmp.eq.s32.totalorder %s15, 0
      %p56 = por %p54, %p55
      %p57 = scmp.ne.s32.totalorder %s46, %s49
      %p58 = scmp.eq.s32.totalorder %s20, 1
      %p59 = por %p57, %p58
      %p60 = scmp.ne.s32.totalorder %s49, %s50
      %p61 = scmp.eq.s32.totalorder %s20, 0
      %p62 = por %p60, %p61
      %p63 = scmp.ne.s32.totalorder %s49, %s50
      %p64 = scmp.eq.s32.totalorder %s21, 1
      %p65 = por %p63, %p64
      %p67 = scmp.ne.s32.totalorder %s50, %s66
      %p68 = scmp.eq.s32.totalorder %s21, 0
      %p69 = por %p67, %p68
      %s71 = sadd.s32 %s70, 1
      %p74 = scmp.eq.s32.totalorder %s15, 1
      %p75 = scmp.ne.s32.totalorder %s70, %s72
      %p76 = scmp.eq.s32.totalorder %s15, 0
      %p77 = por %p75, %p76
      %p78 = scmp.ne.s32.totalorder %s70, %s72
      %p79 = scmp.eq.s32.totalorder %s20, 1
      %p80 = por %p78, %p79
      %p81 = scmp.ne.s32.totalorder %s72, %s73
      %p82 = scmp.eq.s32.totalorder %s20, 0
      %p83 = por %p81, %p82
      %p84 = scmp.ne.s32.totalorder %s72, %s73
      %p85 = scmp.eq.s32.totalorder %s21, 1
      %p86 = por %p84, %p85
      %p88 = scmp.ne.s32.totalorder %s73, %s87
      %p89 = scmp.eq.s32.totalorder %s21, 0
      %p90 = por %p88, %p89
      %s92 = sadd.s32 %s91, 1
      %p95 = scmp.eq.s32.totalorder %s15, 1
      %p96 = scmp.ne.s32.totalorder %s91, %s93
      %p97 = scmp.eq.s32.totalorder %s15, 0
      %p98 = por %p96, %p97
      %p99 = scmp.ne.s32.totalorder %s91, %s93
      %p100 = scmp.eq.s32.totalorder %s20, 1
      %p101 = por %p99, %p100
      %p102 = scmp.ne.s32.totalorder %s93, %s94
      %p103 = scmp.eq.s32.totalorder %s20, 0
      %p104 = por %p102, %p103
      %p105 = scmp.ne.s32.totalorder %s93, %s94
      %p106 = scmp.eq.s32.totalorder %s21, 1
      %p107 = por %p105, %p106
      %p109 = scmp.ne.s32.totalorder %s94, %s108
      %p110 = scmp.eq.s32.totalorder %s21, 0
      %p111 = por %p109, %p110
      %s112 = ssub.s32 %s24, %s33
      %p113 = scmp.eq.s32.totalorder %s112, 0
      %s115 = sadd.s32 %s114, 1
      %s116 = scalar_select %p113, %s114, %s115
      %p119 = pneg %p113
      %p120 = scmp.eq.s32.totalorder %s15, 1
      %p121 = por %p119, %p120
      %p122 = scmp.ne.s32.totalorder %s114, %s117
      %p123 = scmp.eq.s32.totalorder %s15, 0
      %p124 = por %p122, %p123
      %p125 = scmp.ne.s32.totalorder %s114, %s117
      %p126 = scmp.eq.s32.totalorder %s20, 1
      %p127 = por %p125, %p126
      %p128 = scmp.ne.s32.totalorder %s117, %s118
      %p129 = scmp.eq.s32.totalorder %s20, 0
      %p130 = por %p128, %p129
      %p131 = scmp.ne.s32.totalorder %s117, %s118
      %p132 = scmp.eq.s32.totalorder %s21, 1
      %p133 = por %p131, %p132
      %p135 = scmp.ne.s32.totalorder %s118, %s134
      %p136 = scmp.eq.s32.totalorder %s21, 0
      %p137 = por %p135, %p136
      %s138 = ssub.s32 %s24, %s33
      %p139 = scmp.eq.s32.totalorder %s138, 0
      %s141 = sadd.s32 %s140, 1
      %s142 = scalar_select %p139, %s140, %s141
      %p145 = pneg %p139
      %p146 = scmp.eq.s32.totalorder %s15, 1
      %p147 = por %p145, %p146
      %p148 = scmp.ne.s32.totalorder %s140, %s143
      %p149 = scmp.eq.s32.totalorder %s15, 0
      %p150 = por %p148, %p149
      %p151 = scmp.ne.s32.totalorder %s140, %s143
      %p152 = scmp.eq.s32.totalorder %s20, 1
      %p153 = por %p151, %p152
      %p154 = scmp.ne.s32.totalorder %s143, %s144
      %p155 = scmp.eq.s32.totalorder %s20, 0
      %p156 = por %p154, %p155
      %p157 = scmp.ne.s32.totalorder %s143, %s144
      %p158 = scmp.eq.s32.totalorder %s21, 1
      %p159 = por %p157, %p158
      %p161 = scmp.ne.s32.totalorder %s144, %s160
      %p162 = scmp.eq.s32.totalorder %s21, 0
      %p163 = por %p161, %p162
      %s164 = ssub.s32 %s24, %s33
      %s165 = ssub.s32 %s22, %s41
      %s166 = sor.u32 %s164, %s165
      %s167 = ssub.s32 %s23, %s37
      %s168 = sor.u32 %s166, %s167
      %p169 = scmp.eq.s32.totalorder %s168, 0
      %s171 = sadd.s32 %s170, 1
      %s172 = scalar_select %p169, %s170, %s171
      %p175 = pneg %p169
      %p176 = scmp.eq.s32.totalorder %s15, 1
      %p177 = por %p175, %p176
      %p178 = scmp.ne.s32.totalorder %s170, %s173
      %p179 = scmp.eq.s32.totalorder %s15, 0
      %p180 = por %p178, %p179
      %p181 = scmp.ne.s32.totalorder %s170, %s173
      %p182 = scmp.eq.s32.totalorder %s20, 1
      %p183 = por %p181, %p182
      %p184 = scmp.ne.s32.totalorder %s173, %s174
      %p185 = scmp.eq.s32.totalorder %s20, 0
      %p186 = por %p184, %p185
      %p187 = scmp.ne.s32.totalorder %s173, %s174
      %p188 = scmp.eq.s32.totalorder %s21, 1
      %p189 = por %p187, %p188
      %p191 = scmp.ne.s32.totalorder %s174, %s190
      %p192 = scmp.eq.s32.totalorder %s21, 0
      %p193 = por %p191, %p192
      %p194 = scmp.le.s32.totalorder 1, %s15
      %p195 = scmp.lt.s32.totalorder %s15, 3
      %p196 = pnand %p194, %p195
      %p197 = pneg %p196
      // Predicated region
      $region9: #{tpu_custom_call.1} parent=5 // pred_check
        _
      $region10: #{tpu_custom_call.1} parent=5 // pred_check_branch
        %199 = sbr.rel (%p196) target = $region12
      $region11: #{tpu_custom_call.1} parent=5 // pred_region
        %s200 = ssub.s32 %s15, 1
        // Predicated region
        $region13: #{tpu_custom_call.1} parent=11 // pred_check
          %p201 = pneg %p83
        $region14: #{tpu_custom_call.1} parent=11 // pred_check_branch
          %203 = sbr.rel (%p201) target = $region16
        $region15: #{tpu_custom_call.1} parent=11 // pred_region
          %205 = vsyncadd [#allocation6], 0
          %s207 = sshll.u32 %s1, 4
          %s208 = int_to_ptr.hbm [resolvable:$true] %s207
          %s209 = sshll.u32 [#allocation5], 4
          %s210 = int_to_ptr.vmem [resolvable:$true] %s209
          %212 = dma.hbm_to_vmem [thread:$0]  %s208, 16, %s210, [#allocation6]
        $region16: #{tpu_custom_call.1} parent=11 // pred_fallthru
          _
        // Predicated region
        $region17: #{tpu_custom_call.1} parent=11 // pred_check
          %p213 = pneg %p104
        $region18: #{tpu_custom_call.1} parent=11 // pred_check_branch
          %215 = sbr.rel (%p213) target = $region20
        $region19: #{tpu_custom_call.1} parent=11 // pred_region
          _
        $region20: #{tpu_custom_call.1} parent=11 // pred_fallthru
          _
        // Predicated region
        $region21: #{tpu_custom_call.1} parent=11 // pred_check
          %p216 = pneg %p130
        $region22: #{tpu_custom_call.1} parent=11 // pred_check_branch
          %218 = sbr.rel (%p216) target = $region24
        $region23: #{tpu_custom_call.1} parent=11 // pred_region
          %220 = vsyncadd [#allocation6], 0
          %s221 = smul.addr %s27, 4
          %s222 = smul.addr %s221, 4
          %s223 = scalar_lea.hbm %s3, %s222
          %s224 = sshll.u32 %s223, 4
          %s225 = int_to_ptr.hbm [resolvable:$true] %s224
          %s226 = sshll.u32 [#allocation7], 4
          %s227 = int_to_ptr.vmem [resolvable:$true] %s226
          %232 = dma.hbm_to_vmem [thread:$0]  %s225, 256, %s227, [#allocation6], 64, 64, 4
        $region24: #{tpu_custom_call.1} parent=11 // pred_fallthru
          _
        // Predicated region
        $region25: #{tpu_custom_call.1} parent=11 // pred_check
          %p233 = pneg %p156
        $region26: #{tpu_custom_call.1} parent=11 // pred_check_branch
          %235 = sbr.rel (%p233) target = $region28
        $region27: #{tpu_custom_call.1} parent=11 // pred_region
          %p236 = scmp.lt.s32.totalorder %s27, 0
          %s237 = scalar_select %p236, %s27, 0
          %s238 = scalar_lea.vmem %s4, %s237
        $region28: #{tpu_custom_call.1} parent=11 // pred_fallthru
          _
      $region12: #{tpu_custom_call.1} parent=5 // pred_fallthru
        _
      %p239 = scmp.lt.s32.totalorder %s15, 2
      // Predicated region
      $region29: #{tpu_custom_call.1} parent=5 // pred_check
        %p240 = pneg %p239
      $region30: #{tpu_custom_call.1} parent=5 // pred_check_branch
        %242 = sbr.rel (%p240) target = $region32
      $region31: #{tpu_custom_call.1} parent=5 // pred_region
        // Predicated region
        $region33: #{tpu_custom_call.1} parent=31 // pred_check
          %p243 = pneg %p56
        $region34: #{tpu_custom_call.1} parent=31 // pred_check_branch
          %245 = sbr.rel (%p243) target = $region36
        $region35: #{tpu_custom_call.1} parent=31 // pred_region
          %s246 = sand.u32 %s46, 1
          %s247 = scalar_lea.sflag [#allocation4], %s246
          %s248 = sand.u32 %s46, 1
          %s249 = smul.addr %s248, 8
          %s250 = scalar_lea.vmem [#allocation3], %s249
          %252 = vsyncadd %s247, 0
          %s253 = sadd.s32 %s23, %s22
          %s254 = smul.addr %s253, 8
          %s255 = scalar_lea.hbm %s0, %s254
          %s257 = sshll.u32 %s255, 4
          %s258 = int_to_ptr.hbm [resolvable:$true] %s257
          %s259 = sshll.u32 %s250, 4
          %s260 = int_to_ptr.vmem [resolvable:$true] %s259
          %262 = dma.hbm_to_vmem [thread:$0]  %s258, 128, %s260, %s247
        $region36: #{tpu_custom_call.1} parent=31 // pred_fallthru
          _
      $region32: #{tpu_custom_call.1} parent=5 // pred_fallthru
        _
      %p263 = scmp.le.s32.totalorder 1, %s15
      %p264 = scmp.lt.s32.totalorder %s15, 3
      %p265 = pnand %p263, %p264
      %p266 = pneg %p265
      // Predicated region
      $region37: #{tpu_custom_call.1} parent=5 // pred_check
        _
      $region38: #{tpu_custom_call.1} parent=5 // pred_check_branch
        %268 = sbr.rel (%p265) target = $region40
      $region39: #{tpu_custom_call.1} parent=5 // pred_region
        %s269 = ssub.s32 %s15, 1
        %s270 = sand.u32 %s49, 1
        %s271 = scalar_lea.sflag [#allocation4], %s270
        %s272 = sand.u32 %s49, 1
        %s273 = smul.addr %s272, 8
        %s274 = scalar_lea.vmem [#allocation3], %s273
        // Predicated region
        $region41: #{tpu_custom_call.1} parent=39 // pred_check
          %p275 = pneg %p62
        $region42: #{tpu_custom_call.1} parent=39 // pred_check_branch
          %277 = sbr.rel (%p275) target = $region44
        $region43: #{tpu_custom_call.1} parent=39 // pred_region
          %279 = dma.done %s271, 128
        $region44: #{tpu_custom_call.1} parent=39 // pred_fallthru
          _
        // Predicated region
        $region45: #{tpu_custom_call.1} parent=39 // pred_check
          %p280 = pneg %p83
        $region46: #{tpu_custom_call.1} parent=39 // pred_check_branch
          %282 = sbr.rel (%p280) target = $region48
        $region47: #{tpu_custom_call.1} parent=39 // pred_region
          %284 = dma.done [#allocation6], 16
        $region48: #{tpu_custom_call.1} parent=39 // pred_fallthru
          _
        // Predicated region
        $region49: #{tpu_custom_call.1} parent=39 // pred_check
          %p285 = pneg %p130
        $region50: #{tpu_custom_call.1} parent=39 // pred_check_branch
          %287 = sbr.rel (%p285) target = $region52
        $region51: #{tpu_custom_call.1} parent=39 // pred_region
          %289 = dma.done [#allocation6], 256
        $region52: #{tpu_custom_call.1} parent=39 // pred_fallthru
          _
        %s290 = sand.u32 %s49, 1
        %s291 = scalar_lea.sflag [#allocation4], %s290
        %s292 = sand.u32 %s49, 1
        %s293 = smul.addr %s292, 8
        %s294 = scalar_lea.vmem [#allocation3], %s293
        %p295 = pneg %p62
        %p296 = pneg %p59
        %p297 = pneg %p83
        %p298 = pneg %p80
        %p299 = pneg %p104
        %p300 = pneg %p101
        %p301 = pneg %p130
        %p302 = pneg %p127
        %p303 = scmp.lt.s32.totalorder %s27, 0
        %s304 = scalar_select %p303, %s27, 0
        %s305 = scalar_lea.vmem %s4, %s304
        %p306 = pneg %p156
        %p307 = pneg %p153
        %p308 = pneg %p186
        %p309 = pneg %p183
        %s310 = sand.u32 %s173, 1
        %s311 = sand.u32 %s173, 1
        %s312 = smul.addr %s311, 48
        %s313 = scalar_lea.vmem [#allocation8], %s312
        %p314 = scmp.lt.s32.totalorder %s27, 0
        %s315 = scalar_select %p314, %s27, 0
        %s316 = scalar_lea.vmem %s4, %s315
        %s317 = smul.u32 12, %s27
        %p319 = scmp.eq.s32.totalorder %s27, 0
        // Predicated region
        $region53: #{tpu_custom_call.1} parent=39 // pred_check
          %p320 = pneg %p319
        $region54: #{tpu_custom_call.1} parent=39 // pred_check_branch
          %322 = sbr.rel (%p320) target = $region56
        $region55: #{tpu_custom_call.1} parent=39 // pred_region
          %v323 = vld [vmem:[%s274] sm:$0xff]
          %v324 = vld [vmem:[#allocation5] sm:$0x1]
          %v325 = vld [vmem:[%s2] sm:$0x1]
          %vm326 = vcmask 261120
          %v327 = vsel %vm326, %v323, 0.0
          %328 = vadd.xlane.f32.xlu0 %v327
          %v329 = vpop.xlane.xlu0 %328
          %v330 = vrcp.pop 32.0
          %v331 = vmul.f32 32.0, %v330
          %v332 = vsub.f32 1.0, %v331
          %v333 = vmul.f32 %v330, %v332
          %v334 = vadd.f32 %v330, %v333
          %vm335 = vweird.f32 %v330
          %v336 = vsel %vm335, %v330, %v334
          %v337 = vmul.f32 %v329, %v336
          %v338 = vsub.f32 %v323, %v337
          %v339 = vmul.f32 %v338, %v338
          %v340 = vsel %vm326, %v339, 0.0
          %341 = vadd.xlane.f32.xlu0 %v340
          %v342 = vpop.xlane.xlu0 %341
          %v343 = vmul.f32 %v342, %v336
          %v344 = vadd.f32 %v343, 1e-05
          %v345 = vrsqrt.pop %v344
          %v346 = vmul.f32 %v345, %v344
          %v347 = vmul.f32 %v346, %v345
          %v348 = vmul.f32 0.5, %v347
          %v349 = vsub.f32 1.5, %v348
          %v350 = vmul.f32 %v345, %v349
          %vm351 = vweird.f32 %v344
          %vm352 = vweird.f32 %v345
          %vm353 = vmor %vm351, %vm352
          %v354 = vsel %vm353, %v345, %v350
          %v355 = vmul.f32 %v338, %v354
          %v357 = vperm.slane %v324, 0
          %v359 = vmul.f32 %v355, %v357
          %v361 = vperm.slane %v325, 0
          %v363 = vadd.f32 %v359, %v361
          %v364 = vpack.c.bf16 %v363, %v363
          %vm365 = vcmask 257024
          %366 = vst.msk [vmem:[#allocation2] sm:$0xf] %vm365, %v364
        $region56: #{tpu_custom_call.1} parent=39 // pred_fallthru
          _
        %v367 = vld [vmem:[#allocation2] sm:$0xf]
        %v368 = vld [vmem:[#allocation7] sm:$0xf]
        %v369 = vld [vmem:[#allocation7 + $0x4] sm:$0xf]
        %v370 = vld [vmem:[#allocation7 + $0x8] sm:$0xf]
        %v371 = vld [vmem:[#allocation7 + $0xc] sm:$0xf]
        %v372 = vld [vmem:[%s316] sm:$0x1]
        %v374 = vperm.slane %v372, 0
        %v380 = vunpack.c.l.b16 %v368
        %v381 = vunpack.c.l.b16 %v369
        %v382 = vunpack.c.l.b16 %v370
        %v383 = vunpack.c.l.b16 %v371
        %v384 = vpack.c.b16 %v381, %v380
        %v385 = vpack.c.b16 %v383, %v382
        %vm388 = vcmask 261120
        %v390 = vsel %vm388, %v367, 0
        %392 = vmatpush.bf16.msra.mxu0 0
        %393 = vmatpush.bf16.msra.mxu0 0
        %394 = vmatpush.bf16.msra.mxu0 0
        %395 = vmatpush.bf16.msra.mxu0 0
        %396 = vmatpush.bf16.msra.mxu0 0
        %397 = vmatpush.bf16.msra.mxu0 0
        %398 = vmatpush.bf16.msra.mxu0 %v385
        %399 = vmatpush.bf16.msra.mxu0 %v384
        %400 = vmatmul.bf16.gmra.mxu0 %v390
        %v401 = vpop.f32.mrf.mxu0
        %v402 = vadd.f32 %v374, %v401
        %v403 = vpop.f32.mrf.mxu0
        %404 = vdwg.mxu0
        %v405 = vpack.c.bf16 %v402, %v402
        %vm406 = vcmask 60416
        %407 = vst.msk [vmem:[%s313] sm:$0xf] %vm406, %v405
        %409 = vrot.lane.b32.xlu0 %v405, 120
        %v410 = vpop.permute.xlu0 %409
        %s412 = scalar_lea.vmem %s313, 4 [#allocation8]
        %413 = vst.msk [vmem:[%s412] sm:$0xf] %vm406, %v410
        %414 = vrot.lane.b32.xlu0 %v405, 112
        %v415 = vpop.permute.xlu0 %414
        %s417 = scalar_lea.vmem %s313, 8 [#allocation8]
        %418 = vst.msk [vmem:[%s417] sm:$0xf] %vm406, %v415
        %419 = vrot.lane.b32.xlu0 %v405, 104
        %v420 = vpop.permute.xlu0 %419
        %s422 = scalar_lea.vmem %s313, 12 [#allocation8]
        %423 = vst.msk [vmem:[%s422] sm:$0xf] %vm406, %v420
        %424 = vrot.lane.b32.xlu0 %v405, 96
        %v425 = vpop.permute.xlu0 %424
        %s427 = scalar_lea.vmem %s313, 16 [#allocation8]
        %428 = vst.msk [vmem:[%s427] sm:$0xf] %vm406, %v425
        %429 = vrot.lane.b32.xlu0 %v405, 88
        %v430 = vpop.permute.xlu0 %429
        %s432 = scalar_lea.vmem %s313, 20 [#allocation8]
        %433 = vst.msk [vmem:[%s432] sm:$0xf] %vm406, %v430
        %434 = vrot.lane.b32.xlu0 %v405, 80
        %v435 = vpop.permute.xlu0 %434
        %s437 = scalar_lea.vmem %s313, 24 [#allocation8]
        %438 = vst.msk [vmem:[%s437] sm:$0xf] %vm406, %v435
        %439 = vrot.lane.b32.xlu0 %v405, 72
        %v440 = vpop.permute.xlu0 %439
        %s442 = scalar_lea.vmem %s313, 28 [#allocation8]
        %443 = vst.msk [vmem:[%s442] sm:$0xf] %vm406, %v440
        %444 = vrot.lane.b32.xlu0 %v405, 64
        %v445 = vpop.permute.xlu0 %444
        %s447 = scalar_lea.vmem %s313, 32 [#allocation8]
        %448 = vst.msk [vmem:[%s447] sm:$0xf] %vm406, %v445
        %449 = vrot.lane.b32.xlu0 %v405, 56
        %v450 = vpop.permute.xlu0 %449
        %s452 = scalar_lea.vmem %s313, 36 [#allocation8]
        %453 = vst.msk [vmem:[%s452] sm:$0xf] %vm406, %v450
        %454 = vrot.lane.b32.xlu0 %v405, 48
        %v455 = vpop.permute.xlu0 %454
        %s457 = scalar_lea.vmem %s313, 40 [#allocation8]
        %458 = vst.msk [vmem:[%s457] sm:$0xf] %vm406, %v455
        %459 = vrot.lane.b32.xlu0 %v405, 40
        %v460 = vpop.permute.xlu0 %459
        %s462 = scalar_lea.vmem %s313, 44 [#allocation8]
        %463 = vst.msk [vmem:[%s462] sm:$0xf] %vm406, %v460
        %s464 = sand.u32 %s173, 1
        %s465 = sand.u32 %s173, 1
        %s466 = smul.addr %s465, 48
        %s467 = scalar_lea.vmem [#allocation8], %s466
        // Predicated region
        $region57: #{tpu_custom_call.1} parent=39 // pred_check
          %p468 = pneg %p183
        $region58: #{tpu_custom_call.1} parent=39 // pred_check_branch
          %470 = sbr.rel (%p468) target = $region60
        $region59: #{tpu_custom_call.1} parent=39 // pred_region
          %s471 = smul.u32 12, %s27
          %s472 = sadd.s32 %s26, %s25
          %s473 = smul.addr %s471, 2
          %s474 = sadd.s32 %s472, %s473
          %s475 = smul.addr %s474, 4
          %s476 = scalar_lea.vmem %s5, %s475
          // Predicated region
          $region61: #{tpu_custom_call.1} parent=59 // pred_check
            _
          $region62: #{tpu_custom_call.1} parent=59 // pred_check_branch
            %478 = sbr.rel (0) target = $region64
          $region63: #{tpu_custom_call.1} parent=59 // pred_region
            // Predicated region
            $region65: #{tpu_custom_call.1} parent=63 // pred_check
              _
            $region66: #{tpu_custom_call.1} parent=63 // pred_check_branch
              %480 = sbr.rel target = $region68
            $region67: #{tpu_custom_call.1} parent=63 // pred_region
              // Predicated region
              $region80: #{tpu_custom_call.1} parent=67 // pred_check
                _
              $region81: #{tpu_custom_call.1} parent=67 // pred_check_branch
                %518 = sbr.rel (0) target = $region83
              $region82: #{tpu_custom_call.1} parent=67 // pred_region
                loop: start=0, step=1, limit=1
                $region84: #{tpu_custom_call.1} parent=82 // loop_pre_header
                  _
                $region85: #{tpu_custom_call.1} parent=82 // loop_header
                  %s520 = sphi 0, %s524
                  %p521 = scmp.ge.s32.totalorder %s520, 1
                  %s525 = sphi %s467, %s467
                  %s526 = sphi %s476, %s476
                $region86: #{tpu_custom_call.1} parent=82 // loop_header_branch
                  %523 = sbr.rel (%p521) target = $region90
                $region87: #{tpu_custom_call.1} parent=82 // loop_body
                  _
                $region88: #{tpu_custom_call.1} parent=82 // loop_footer
                  %s524 = sadd.s32 1, %s520
                $region89: #{tpu_custom_call.1} parent=82 // loop_footer_branch
                  %519 = sbr.rel target = $region85
                $region90: #{tpu_custom_call.1} parent=82 // loop_exit
                  _
                %s528 = ssub.s32 16, 1
                loop: start=0, step=1, limit=1
                $region91: #{tpu_custom_call.1} parent=82 // loop_pre_header
                  _
                $region92: #{tpu_custom_call.1} parent=82 // loop_header
                  %s530 = sphi 0, %s534
                  %p531 = scmp.ge.s32.totalorder %s530, 1
                  %s535 = sphi %s467, %s467
                  %s536 = sphi %s476, %s476
                $region93: #{tpu_custom_call.1} parent=82 // loop_header_branch
                  %533 = sbr.rel (%p531) target = $region97
                $region94: #{tpu_custom_call.1} parent=82 // loop_body
                  %v537 = vld [vmem:[%s535] sm:%s528]
                  %538 = vst [vmem:[%s536] sm:%s528] %v537
                  %v539 = vld [vmem:[%s535 + $0x4] sm:%s528]
                  %540 = vst [vmem:[%s536 + $0x8] sm:%s528] %v539
                  %v541 = vld [vmem:[%s535 + $0x8] sm:%s528]
                  %542 = vst [vmem:[%s536 + $0x10] sm:%s528] %v541
                  %v543 = vld [vmem:[%s535 + $0xc] sm:%s528]
                  %544 = vst [vmem:[%s536 + $0x18] sm:%s528] %v543
                  %v545 = vld [vmem:[%s535 + $0x10] sm:%s528]
                  %546 = vst [vmem:[%s536 + $0x20] sm:%s528] %v545
                  %v547 = vld [vmem:[%s535 + $0x14] sm:%s528]
                  %548 = vst [vmem:[%s536 + $0x28] sm:%s528] %v547
                  %v549 = vld [vmem:[%s535 + $0x18] sm:%s528]
                  %550 = vst [vmem:[%s536 + $0x30] sm:%s528] %v549
                  %v551 = vld [vmem:[%s535 + $0x1c] sm:%s528]
                  %552 = vst [vmem:[%s536 + $0x38] sm:%s528] %v551
                  %v553 = vld [vmem:[%s535 + $0x20] sm:%s528]
                  %554 = vst [vmem:[%s536 + $0x40] sm:%s528] %v553
                  %v555 = vld [vmem:[%s535 + $0x24] sm:%s528]
                  %556 = vst [vmem:[%s536 + $0x48] sm:%s528] %v555
                  %v557 = vld [vmem:[%s535 + $0x28] sm:%s528]
                  %558 = vst [vmem:[%s536 + $0x50] sm:%s528] %v557
                  %v559 = vld [vmem:[%s535 + $0x2c] sm:%s528]
                  %560 = vst [vmem:[%s536 + $0x58] sm:%s528] %v559
                $region95: #{tpu_custom_call.1} parent=82 // loop_footer
                  %s534 = sadd.s32 1, %s530
                $region96: #{tpu_custom_call.1} parent=82 // loop_footer_branch
                  %529 = sbr.rel target = $region92
                $region97: #{tpu_custom_call.1} parent=82 // loop_exit
                  _
              $region83: #{tpu_custom_call.1} parent=67 // pred_fallthru
                _
            $region68: #{tpu_custom_call.1} parent=63 // pred_fallthru
              _
            // Predicated region
            $region69: #{tpu_custom_call.1} parent=63 // pred_check
              _
            $region70: #{tpu_custom_call.1} parent=63 // pred_check_branch
              %482 = sbr.rel (0) target = $region72
            $region71: #{tpu_custom_call.1} parent=63 // pred_region
              %s484 = ssub.s32 16, 1
              loop: start=0, step=1, limit=1
              $region73: #{tpu_custom_call.1} parent=71 // loop_pre_header
                _
              $region74: #{tpu_custom_call.1} parent=71 // loop_header
                %s486 = sphi 0, %s490
                %p487 = scmp.ge.s32.totalorder %s486, 1
                %s491 = sphi %s467, %s467
                %s492 = sphi %s476, %s476
              $region75: #{tpu_custom_call.1} parent=71 // loop_header_branch
                %489 = sbr.rel (%p487) target = $region79
              $region76: #{tpu_custom_call.1} parent=71 // loop_body
                %v493 = vld [vmem:[%s491] sm:%s484]
                %494 = vst [vmem:[%s492] sm:%s484] %v493
                %v495 = vld [vmem:[%s491 + $0x4] sm:%s484]
                %496 = vst [vmem:[%s492 + $0x8] sm:%s484] %v495
                %v497 = vld [vmem:[%s491 + $0x8] sm:%s484]
                %498 = vst [vmem:[%s492 + $0x10] sm:%s484] %v497
                %v499 = vld [vmem:[%s491 + $0xc] sm:%s484]
                %500 = vst [vmem:[%s492 + $0x18] sm:%s484] %v499
                %v501 = vld [vmem:[%s491 + $0x10] sm:%s484]
                %502 = vst [vmem:[%s492 + $0x20] sm:%s484] %v501
                %v503 = vld [vmem:[%s491 + $0x14] sm:%s484]
                %504 = vst [vmem:[%s492 + $0x28] sm:%s484] %v503
                %v505 = vld [vmem:[%s491 + $0x18] sm:%s484]
                %506 = vst [vmem:[%s492 + $0x30] sm:%s484] %v505
                %v507 = vld [vmem:[%s491 + $0x1c] sm:%s484]
                %508 = vst [vmem:[%s492 + $0x38] sm:%s484] %v507
                %v509 = vld [vmem:[%s491 + $0x20] sm:%s484]
                %510 = vst [vmem:[%s492 + $0x40] sm:%s484] %v509
                %v511 = vld [vmem:[%s491 + $0x24] sm:%s484]
                %512 = vst [vmem:[%s492 + $0x48] sm:%s484] %v511
                %v513 = vld [vmem:[%s491 + $0x28] sm:%s484]
                %514 = vst [vmem:[%s492 + $0x50] sm:%s484] %v513
                %v515 = vld [vmem:[%s491 + $0x2c] sm:%s484]
                %516 = vst [vmem:[%s492 + $0x58] sm:%s484] %v515
              $region77: #{tpu_custom_call.1} parent=71 // loop_footer
                %s490 = sadd.s32 1, %s486
              $region78: #{tpu_custom_call.1} parent=71 // loop_footer_branch
                %485 = sbr.rel target = $region74
              $region79: #{tpu_custom_call.1} parent=71 // loop_exit
                _
            $region72: #{tpu_custom_call.1} parent=63 // pred_fallthru
              _
          $region64: #{tpu_custom_call.1} parent=59 // pred_fallthru
            _
          %561 = vnop
        $region60: #{tpu_custom_call.1} parent=39 // pred_fallthru
          _
      $region40: #{tpu_custom_call.1} parent=5 // pred_fallthru
        _
      %p562 = scmp.le.s32.totalorder 2, %s15
      // Predicated region
      $region98: #{tpu_custom_call.1} parent=5 // pred_check
        %p563 = pneg %p562
      $region99: #{tpu_custom_call.1} parent=5 // pred_check_branch
        %565 = sbr.rel (%p563) target = $region101
      $region100: #{tpu_custom_call.1} parent=5 // pred_region
        %s566 = ssub.s32 %s15, 2
        // Predicated region
        $region102: #{tpu_custom_call.1} parent=100 // pred_check
          %p567 = pneg %p189
        $region103: #{tpu_custom_call.1} parent=100 // pred_check_branch
          %569 = sbr.rel (%p567) target = $region105
        $region104: #{tpu_custom_call.1} parent=100 // pred_region
          %s570 = sand.u32 %s174, 1
          %s571 = sand.u32 %s174, 1
          %s572 = smul.addr %s571, 48
          %s573 = scalar_lea.vmem [#allocation8], %s572
        $region105: #{tpu_custom_call.1} parent=100 // pred_fallthru
          _
      $region101: #{tpu_custom_call.1} parent=5 // pred_fallthru
        _
    $region6: #{tpu_custom_call.1} parent=1 // loop_footer
      %s19 = sadd.s32 1, %s15
    $region7: #{tpu_custom_call.1} parent=1 // loop_footer_branch
      %14 = sbr.rel target = $region3
    $region8: #{tpu_custom_call.1} parent=1 // loop_exit
      _
    %574 = vsyncpa [#allocation4], 1
    %s575 = scalar_lea.sflag [#allocation4], 1
    %576 = vsyncpa %s575, 1
    %577 = vsyncpa [#allocation6], 1

</llo_original>
